<compile_context>
chip_gen: v5e
topology: v5e:2x2
jax: 0.10.0
libtpu: 0.0.40
codegen_flags: <defaults>
</compile_context>

<pallas_src>
import jax
import jax.numpy as jnp
from jax.experimental import pallas as pl
from jax.experimental.pallas import tpu as pltpu

D_IN = 42
D_H1, D_H2, D_OUT = 244, 106, 7
# Lane/reduction-padded hidden sizes (multiples of 128).
P_H1, P_H2 = 256, 128


def gesture_mlp_kernel(x_ref, w1_ref, b1_ref, w2_ref, b2_ref, w3_ref, b3_ref,
                       o_ref):
    # fc1 + ReLU  (x already bf16; f32 accumulate on the MXU)
    x = x_ref[...]
    h1 = jnp.dot(x, w1_ref[...], preferred_element_type=jnp.float32)
    h1 = jnp.maximum(h1 + b1_ref[...], 0.0)
    # (dropout: identity in eval mode)
    # fc2 + ReLU
    h2 = jnp.dot(h1.astype(jnp.bfloat16), w2_ref[...],
                 preferred_element_type=jnp.float32)
    h2 = jnp.maximum(h2 + b2_ref[...], 0.0)
    # (dropout: identity in eval mode)
    # fc3 + ReLU (7-wide output, masked narrow store -- hidden under DMA)
    h3 = jnp.dot(h2.astype(jnp.bfloat16), w3_ref[...],
                 preferred_element_type=jnp.float32)
    o_ref[...] = jnp.maximum(h3 + b3_ref[...], 0.0).astype(o_ref.dtype)


def _pad2(a, rows, cols):
    r, c = a.shape
    return jnp.pad(a, ((0, rows - r), (0, cols - c)))


def prepare_params(params):
    """Zero-pad hidden dims to lane multiples; store weights in bf16 (one-time)."""
    w1, b1, w2, b2, w3, b3 = params
    w1p = _pad2(w1, D_IN, P_H1).astype(jnp.bfloat16)    # (42, 256)
    w2p = _pad2(w2, P_H1, P_H2).astype(jnp.bfloat16)    # (256, 128)
    w3p = _pad2(w3, P_H2, D_OUT).astype(jnp.bfloat16)   # (128, 7)  true output width
    b1p = _pad2(b1, 1, P_H1)                            # f32 biases
    b2p = _pad2(b2, 1, P_H2)
    b3p = b3                                            # (1, 7)
    return w1p, b1p, w2p, b2p, w3p, b3p


def gesture_net_forward(x, padded_params, *, tile_batch=2048):
    """x: (B, 42) float32 or bfloat16.  Returns (B, 7) float32 logits (post-ReLU)."""
    w1, b1, w2, b2, w3, b3 = padded_params
    B = x.shape[0]
    # Feed bf16 activations to the kernel (halves input HBM traffic; x is
    # truncated to bf16 before the MXU regardless).  Production callers should
    # keep activations bf16 upstream to avoid even this cast pass.
    if x.dtype != jnp.bfloat16:
        x = x.astype(jnp.bfloat16)

    # Batch tile: as large as tile_batch, but clamped to ~ceil(B/2) (rounded to
    # 8 sublanes) so there are >= 2 grid steps for v7x's two TensorCores.
    half = ((pl.cdiv(B, 2) + 7) // 8) * 8
    tb = max(8, min(tile_batch, half))
    grid = (pl.cdiv(B, tb),)

    resident = lambda i: (0, 0)      # weights/biases stay put across grid steps
    batch_tile = lambda i: (i, 0)

    flops = 2 * B * (D_IN * D_H1 + D_H1 * D_H2 + D_H2 * D_OUT)
    bytes_accessed = (
        B * D_IN * 2 + B * D_OUT * 4                         # bf16 x in, f32 (B,7) out
        + 2 * (D_IN * P_H1 + P_H1 * P_H2 + P_H2 * D_OUT)     # bf16 weights
        + 4 * (P_H1 + P_H2 + D_OUT))                         # f32 biases

    out = pl.pallas_call(
        gesture_mlp_kernel,
        out_shape=jax.ShapeDtypeStruct((B, D_OUT), jnp.float32),
        grid=grid,
        in_specs=[
            pl.BlockSpec((tb, D_IN), batch_tile),
            pl.BlockSpec((D_IN, P_H1), resident),
            pl.BlockSpec((1, P_H1), resident),
            pl.BlockSpec((P_H1, P_H2), resident),
            pl.BlockSpec((1, P_H2), resident),
            pl.BlockSpec((P_H2, D_OUT), resident),
            pl.BlockSpec((1, D_OUT), resident),
        ],
        out_specs=pl.BlockSpec((tb, D_OUT), batch_tile),
        compiler_params=pltpu.CompilerParams(
            dimension_semantics=("parallel",),
            vmem_limit_bytes=32 * 1024 * 1024,
        ),
        cost_estimate=pl.CostEstimate(
            flops=flops, transcendentals=0, bytes_accessed=bytes_accessed),
    )(x, w1, b1, w2, b2, w3, b3)
    return out


def init_linear(key, fan_in, fan_out):
    """PyTorch nn.Linear default init: U(-1/sqrt(fan_in), 1/sqrt(fan_in))."""
    kw, kb = jax.random.split(key)
    bound = 1.0 / jnp.sqrt(jnp.float32(fan_in))
    w = jax.random.uniform(kw, (fan_in, fan_out), jnp.float32, -bound, bound)
    b = jax.random.uniform(kb, (1, fan_out), jnp.float32, -bound, bound)
    return w, b


def reference_forward(x, params):
    w1, b1, w2, b2, w3, b3 = params
    h1 = jnp.maximum(x @ w1 + b1, 0.0)
    h2 = jnp.maximum(h1 @ w2 + b2, 0.0)
    return jnp.maximum(h2 @ w3 + b3, 0.0)


if __name__ == "__main__":
    key = jax.random.PRNGKey(0)
    k_x, k1, k2, k3 = jax.random.split(key, 4)

    batch = 32
    x = jax.random.normal(k_x, (batch, D_IN), jnp.float32)

    w1, b1 = init_linear(k1, D_IN, D_H1)
    w2, b2 = init_linear(k2, D_H1, D_H2)
    w3, b3 = init_linear(k3, D_H2, D_OUT)
    params = (w1, b1, w2, b2, w3, b3)
    padded_params = prepare_params(params)

    # With batch=32 the v7x clamp gives tb=16 -> grid=(2,), so the demo
    # exercises a multi-step grid; production batches just use tile_batch=2048.
    out = gesture_net_forward(x, padded_params)
    out = jax.block_until_ready(out)

    ref = reference_forward(x, params)
    assert out.shape == (batch, D_OUT)
    # bf16 MXU inputs with f32 accumulation: allow small quantization error.
    assert jnp.allclose(out, ref, atol=2e-2, rtol=2e-2), \
        float(jnp.max(jnp.abs(out - ref)))

    print("KERNEL_OK")
</pallas_src>

<mosaic_0001>
module attributes {stable_mosaic.version = 11 : i64} {
  func.func @gesture_mlp_kernel(%arg0: i32, %arg1: memref<16x42xbf16, #tpu.memory_space<vmem>>, %arg2: memref<42x256xbf16, #tpu.memory_space<vmem>>, %arg3: memref<1x256xf32, #tpu.memory_space<vmem>>, %arg4: memref<256x128xbf16, #tpu.memory_space<vmem>>, %arg5: memref<1x128xf32, #tpu.memory_space<vmem>>, %arg6: memref<128x7xbf16, #tpu.memory_space<vmem>>, %arg7: memref<1x7xf32, #tpu.memory_space<vmem>>, %arg8: memref<16x7xf32, #tpu.memory_space<vmem>>) attributes {dimension_semantics = [#tpu.dimension_semantics<parallel>], iteration_bounds = array<i64: 2>, scalar_prefetch = 0 : i64, scratch_operands = 0 : i64, tpu.core_type = #tpu.core_type<tc>, window_params = [{transform_indices = @transform_0, window_bounds = array<i64: 16, 42>}, {pipeline_mode = #tpu.pipeline_mode<synchronous>, transform_indices = @transform_1, window_bounds = array<i64: 42, 256>}, {pipeline_mode = #tpu.pipeline_mode<synchronous>, transform_indices = @transform_2, window_bounds = array<i64: 1, 256>}, {pipeline_mode = #tpu.pipeline_mode<synchronous>, transform_indices = @transform_3, window_bounds = array<i64: 256, 128>}, {pipeline_mode = #tpu.pipeline_mode<synchronous>, transform_indices = @transform_4, window_bounds = array<i64: 1, 128>}, {pipeline_mode = #tpu.pipeline_mode<synchronous>, transform_indices = @transform_5, window_bounds = array<i64: 128, 7>}, {pipeline_mode = #tpu.pipeline_mode<synchronous>, transform_indices = @transform_6, window_bounds = array<i64: 1, 7>}, {transform_indices = @transform_7, window_bounds = array<i64: 16, 7>}]} {
    %c0 = arith.constant 0 : index
    %c0_0 = arith.constant 0 : index
    %0 = vector.load %arg1[%c0, %c0_0] : memref<16x42xbf16, #tpu.memory_space<vmem>>, vector<16x42xbf16>
    %c0_1 = arith.constant 0 : index
    %c0_2 = arith.constant 0 : index
    %1 = vector.load %arg2[%c0_1, %c0_2] : memref<42x256xbf16, #tpu.memory_space<vmem>>, vector<42x256xbf16>
    %cst = arith.constant dense<0.000000e+00> : vector<16x256xf32>
    %2 = tpu.matmul %0, %1, %cst {dimension_numbers = #tpu.dot_dimension_numbers<[1], [0], [0], [1], [0, 0, 1, 1], [], []>} : vector<16x42xbf16>, vector<42x256xbf16>, vector<16x256xf32> -> vector<16x256xf32>
    %c0_3 = arith.constant 0 : index
    %c0_4 = arith.constant 0 : index
    %3 = vector.load %arg3[%c0_3, %c0_4] : memref<1x256xf32, #tpu.memory_space<vmem>>, vector<1x256xf32>
    %4 = vector.broadcast %3 : vector<1x256xf32> to vector<16x256xf32>
    %5 = arith.addf %2, %4 : vector<16x256xf32>
    %cst_5 = arith.constant 0.000000e+00 : f32
    %6 = vector.broadcast %cst_5 : f32 to vector<16x256xf32>
    %7 = arith.maximumf %5, %6 : vector<16x256xf32>
    %8 = arith.truncf %7 : vector<16x256xf32> to vector<16x256xbf16>
    %c0_6 = arith.constant 0 : index
    %c0_7 = arith.constant 0 : index
    %9 = vector.load %arg4[%c0_6, %c0_7] : memref<256x128xbf16, #tpu.memory_space<vmem>>, vector<256x128xbf16>
    %cst_8 = arith.constant dense<0.000000e+00> : vector<16x128xf32>
    %10 = tpu.matmul %8, %9, %cst_8 {dimension_numbers = #tpu.dot_dimension_numbers<[1], [0], [0], [1], [0, 0, 1, 1], [], []>} : vector<16x256xbf16>, vector<256x128xbf16>, vector<16x128xf32> -> vector<16x128xf32>
    %c0_9 = arith.constant 0 : index
    %c0_10 = arith.constant 0 : index
    %11 = vector.load %arg5[%c0_9, %c0_10] : memref<1x128xf32, #tpu.memory_space<vmem>>, vector<1x128xf32>
    %12 = vector.broadcast %11 : vector<1x128xf32> to vector<16x128xf32>
    %13 = arith.addf %10, %12 : vector<16x128xf32>
    %cst_11 = arith.constant 0.000000e+00 : f32
    %14 = vector.broadcast %cst_11 : f32 to vector<16x128xf32>
    %15 = arith.maximumf %13, %14 : vector<16x128xf32>
    %16 = arith.truncf %15 : vector<16x128xf32> to vector<16x128xbf16>
    %c0_12 = arith.constant 0 : index
    %c0_13 = arith.constant 0 : index
    %17 = vector.load %arg6[%c0_12, %c0_13] : memref<128x7xbf16, #tpu.memory_space<vmem>>, vector<128x7xbf16>
    %cst_14 = arith.constant dense<0.000000e+00> : vector<16x7xf32>
    %18 = tpu.matmul %16, %17, %cst_14 {dimension_numbers = #tpu.dot_dimension_numbers<[1], [0], [0], [1], [0, 0, 1, 1], [], []>} : vector<16x128xbf16>, vector<128x7xbf16>, vector<16x7xf32> -> vector<16x7xf32>
    %c0_15 = arith.constant 0 : index
    %c0_16 = arith.constant 0 : index
    %19 = vector.load %arg7[%c0_15, %c0_16] : memref<1x7xf32, #tpu.memory_space<vmem>>, vector<1x7xf32>
    %20 = vector.broadcast %19 : vector<1x7xf32> to vector<16x7xf32>
    %21 = arith.addf %18, %20 : vector<16x7xf32>
    %cst_17 = arith.constant 0.000000e+00 : f32
    %22 = vector.broadcast %cst_17 : f32 to vector<16x7xf32>
    %23 = arith.maximumf %21, %22 : vector<16x7xf32>
    %c0_18 = arith.constant 0 : index
    %c0_19 = arith.constant 0 : index
    %24 = vector.load %arg8[%c0_18, %c0_19] : memref<16x7xf32, #tpu.memory_space<vmem>>, vector<16x7xf32>
    tpu.vector_store %arg8[%c0_18, %c0_19], %23 {strides = array<i32>} : memref<16x7xf32, #tpu.memory_space<vmem>>, vector<16x7xf32>,
    return
  }
  func.func @transform_0(%arg0: i32) -> (i32, i32) {
    %c0_i32 = arith.constant 0 : i32
    %c0_i32_0 = arith.constant 0 : i32
    return %arg0, %c0_i32 : i32, i32
  }
  func.func @transform_1(%arg0: i32) -> (i32, i32) {
    %c0_i32 = arith.constant 0 : i32
    %c0_i32_0 = arith.constant 0 : i32
    %c0_i32_1 = arith.constant 0 : i32
    return %c0_i32, %c0_i32_0 : i32, i32
  }
  func.func @transform_2(%arg0: i32) -> (i32, i32) {
    %c0_i32 = arith.constant 0 : i32
    %c0_i32_0 = arith.constant 0 : i32
    %c0_i32_1 = arith.constant 0 : i32
    return %c0_i32, %c0_i32_0 : i32, i32
  }
  func.func @transform_3(%arg0: i32) -> (i32, i32) {
    %c0_i32 = arith.constant 0 : i32
    %c0_i32_0 = arith.constant 0 : i32
    %c0_i32_1 = arith.constant 0 : i32
    return %c0_i32, %c0_i32_0 : i32, i32
  }
  func.func @transform_4(%arg0: i32) -> (i32, i32) {
    %c0_i32 = arith.constant 0 : i32
    %c0_i32_0 = arith.constant 0 : i32
    %c0_i32_1 = arith.constant 0 : i32
    return %c0_i32, %c0_i32_0 : i32, i32
  }
  func.func @transform_5(%arg0: i32) -> (i32, i32) {
    %c0_i32 = arith.constant 0 : i32
    %c0_i32_0 = arith.constant 0 : i32
    %c0_i32_1 = arith.constant 0 : i32
    return %c0_i32, %c0_i32_0 : i32, i32
  }
  func.func @transform_6(%arg0: i32) -> (i32, i32) {
    %c0_i32 = arith.constant 0 : i32
    %c0_i32_0 = arith.constant 0 : i32
    %c0_i32_1 = arith.constant 0 : i32
    return %c0_i32, %c0_i32_0 : i32, i32
  }
  func.func @transform_7(%arg0: i32) -> (i32, i32) {
    %c0_i32 = arith.constant 0 : i32
    %c0_i32_0 = arith.constant 0 : i32
    return %arg0, %c0_i32 : i32, i32
  }
}

</mosaic_0001>

<llo_original>
// kernel: tpu_custom_call.1
$region0: #{tpu_custom_call.1}
  #allocation0 [shape = 'u32[]', space=smem, size = 0x4, offset = 0x4, fixed_abs, tag = 'smem constant byte address 0x4 - core index']
  #allocation1 [shape = 'u32[72,128]{1,0:T(1,128)}', space=vmem, size = 0x9000, scoped, tag = 'internal scratch']
  %s0 = inlined_call_operand.vmem [shape: bf16[32,42], index: 0, kind: input, shape index: {}]
  %s1 = inlined_call_operand.vmem [shape: bf16[42,256], index: 1, kind: input, shape index: {}]
  %s2 = inlined_call_operand.vmem [shape: f32[1,256], index: 2, kind: input, shape index: {}]
  %s3 = inlined_call_operand.hbm [shape: bf16[256,128], index: 3, kind: input, shape index: {}]
  %s4 = inlined_call_operand.vmem [shape: f32[1,128], index: 4, kind: input, shape index: {}]
  %s5 = inlined_call_operand.vmem [shape: bf16[128,7], index: 5, kind: input, shape index: {}]
  %s6 = inlined_call_operand.vmem [shape: f32[1,7], index: 6, kind: input, shape index: {}]
  %s7 = inlined_call_operand.vmem [shape: f32[32,7], index: 7, kind: output, shape index: {}]
  %s8 = sld [smem:[#allocation0]]
  $region65: #{tpu_custom_call.1} parent=0
    _
  %s10 = ssub.s32 1, %s8
  %s11 = scalar_select 0, %s10, %s8
  $region1: #{tpu_custom_call.1} parent=0
    #allocation2 [shape = 'u8[65536]{0}', space=vmem, size = 0x10000, scoped, tag = 'input window, operand 3, single buffered']
    #allocation3 [shape = 's32[2]{0}', space=sflag, size = 0x8, scoped, tag = 'scoped memory for tpu_custom_call.1']
    %12 = vsyncpa [#allocation3], 0
    loop: start=0, step=1, limit=4
    $region2: #{tpu_custom_call.1} parent=1 // loop_pre_header
      _
    $region3: #{tpu_custom_call.1} parent=1 // loop_header
      %s14 = sphi 0, %s18
      %p15 = scmp.ge.s32.totalorder %s14, 4
      %s24 = sphi 0, %s26
      %s27 = sphi 0, %s24
      %s28 = sphi 0, %s27
      %s44 = sphi 0, %s28
      %s48 = sphi 0, %s48
      %s50 = sphi 0, %s48
      %s51 = sphi 0, %s50
      %s65 = sphi 0, %s51
      %s69 = sphi 0, %s69
      %s71 = sphi 0, %s69
      %s72 = sphi 0, %s71
      %s86 = sphi 0, %s72
      %s90 = sphi 0, %s90
      %s92 = sphi 0, %s90
      %s93 = sphi 0, %s92
      %s107 = sphi 0, %s93
      %s111 = sphi 0, %s111
      %s113 = sphi 0, %s111
      %s114 = sphi 0, %s113
      %s128 = sphi 0, %s114
      %s132 = sphi 0, %s132
      %s134 = sphi 0, %s132
      %s135 = sphi 0, %s134
      %s149 = sphi 0, %s135
      %s153 = sphi 0, %s153
      %s155 = sphi 0, %s153
      %s156 = sphi 0, %s155
      %s170 = sphi 0, %s156
      %s176 = sphi 0, %s178
      %s179 = sphi 0, %s176
      %s180 = sphi 0, %s179
      %s196 = sphi 0, %s180
    $region4: #{tpu_custom_call.1} parent=1 // loop_header_branch
      %17 = sbr.rel (%p15) target = $region8
    $region5: #{tpu_custom_call.1} parent=1 // loop_body
      %s19 = ssub.s32 %s14, 1
      %s20 = ssub.s32 %s14, 2
      %s21 = sadd.s32 %s14, 1
      %s22 = ssub.s32 %s14, %s21
      %p23 = scmp.eq.s32.totalorder %s22, 0
      %s25 = sadd.s32 %s24, 1
      %s26 = scalar_select %p23, %s24, %s25
      %p29 = pneg %p23
      %p30 = scmp.eq.s32.totalorder %s14, 1
      %p31 = por %p29, %p30
      %p32 = scmp.ne.s32.totalorder %s24, %s27
      %p33 = scmp.eq.s32.totalorder %s14, 0
      %p34 = por %p32, %p33
      %p35 = scmp.ne.s32.totalorder %s24, %s27
      %p36 = scmp.eq.s32.totalorder %s19, 1
      %p37 = por %p35, %p36
      %p38 = scmp.ne.s32.totalorder %s27, %s28
      %p39 = scmp.eq.s32.totalorder %s19, 0
      %p40 = por %p38, %p39
      %p41 = scmp.ne.s32.totalorder %s27, %s28
      %p42 = scmp.eq.s32.totalorder %s20, 1
      %p43 = por %p41, %p42
      %p45 = scmp.ne.s32.totalorder %s28, %s44
      %p46 = scmp.eq.s32.totalorder %s20, 0
      %p47 = por %p45, %p46
      %s49 = sadd.s32 %s48, 1
      %p52 = scmp.eq.s32.totalorder %s14, 1
      %p53 = scmp.ne.s32.totalorder %s48, %s50
      %p54 = scmp.eq.s32.totalorder %s14, 0
      %p55 = por %p53, %p54
      %p56 = scmp.ne.s32.totalorder %s48, %s50
      %p57 = scmp.eq.s32.totalorder %s19, 1
      %p58 = por %p56, %p57
      %p59 = scmp.ne.s32.totalorder %s50, %s51
      %p60 = scmp.eq.s32.totalorder %s19, 0
      %p61 = por %p59, %p60
      %p62 = scmp.ne.s32.totalorder %s50, %s51
      %p63 = scmp.eq.s32.totalorder %s20, 1
      %p64 = por %p62, %p63
      %p66 = scmp.ne.s32.totalorder %s51, %s65
      %p67 = scmp.eq.s32.totalorder %s20, 0
      %p68 = por %p66, %p67
      %s70 = sadd.s32 %s69, 1
      %p73 = scmp.eq.s32.totalorder %s14, 1
      %p74 = scmp.ne.s32.totalorder %s69, %s71
      %p75 = scmp.eq.s32.totalorder %s14, 0
      %p76 = por %p74, %p75
      %p77 = scmp.ne.s32.totalorder %s69, %s71
      %p78 = scmp.eq.s32.totalorder %s19, 1
      %p79 = por %p77, %p78
      %p80 = scmp.ne.s32.totalorder %s71, %s72
      %p81 = scmp.eq.s32.totalorder %s19, 0
      %p82 = por %p80, %p81
      %p83 = scmp.ne.s32.totalorder %s71, %s72
      %p84 = scmp.eq.s32.totalorder %s20, 1
      %p85 = por %p83, %p84
      %p87 = scmp.ne.s32.totalorder %s72, %s86
      %p88 = scmp.eq.s32.totalorder %s20, 0
      %p89 = por %p87, %p88
      %s91 = sadd.s32 %s90, 1
      %p94 = scmp.eq.s32.totalorder %s14, 1
      %p95 = scmp.ne.s32.totalorder %s90, %s92
      %p96 = scmp.eq.s32.totalorder %s14, 0
      %p97 = por %p95, %p96
      %p98 = scmp.ne.s32.totalorder %s90, %s92
      %p99 = scmp.eq.s32.totalorder %s19, 1
      %p100 = por %p98, %p99
      %p101 = scmp.ne.s32.totalorder %s92, %s93
      %p102 = scmp.eq.s32.totalorder %s19, 0
      %p103 = por %p101, %p102
      %p104 = scmp.ne.s32.totalorder %s92, %s93
      %p105 = scmp.eq.s32.totalorder %s20, 1
      %p106 = por %p104, %p105
      %p108 = scmp.ne.s32.totalorder %s93, %s107
      %p109 = scmp.eq.s32.totalorder %s20, 0
      %p110 = por %p108, %p109
      %s112 = sadd.s32 %s111, 1
      %p115 = scmp.eq.s32.totalorder %s14, 1
      %p116 = scmp.ne.s32.totalorder %s111, %s113
      %p117 = scmp.eq.s32.totalorder %s14, 0
      %p118 = por %p116, %p117
      %p119 = scmp.ne.s32.totalorder %s111, %s113
      %p120 = scmp.eq.s32.totalorder %s19, 1
      %p121 = por %p119, %p120
      %p122 = scmp.ne.s32.totalorder %s113, %s114
      %p123 = scmp.eq.s32.totalorder %s19, 0
      %p124 = por %p122, %p123
      %p125 = scmp.ne.s32.totalorder %s113, %s114
      %p126 = scmp.eq.s32.totalorder %s20, 1
      %p127 = por %p125, %p126
      %p129 = scmp.ne.s32.totalorder %s114, %s128
      %p130 = scmp.eq.s32.totalorder %s20, 0
      %p131 = por %p129, %p130
      %s133 = sadd.s32 %s132, 1
      %p136 = scmp.eq.s32.totalorder %s14, 1
      %p137 = scmp.ne.s32.totalorder %s132, %s134
      %p138 = scmp.eq.s32.totalorder %s14, 0
      %p139 = por %p137, %p138
      %p140 = scmp.ne.s32.totalorder %s132, %s134
      %p141 = scmp.eq.s32.totalorder %s19, 1
      %p142 = por %p140, %p141
      %p143 = scmp.ne.s32.totalorder %s134, %s135
      %p144 = scmp.eq.s32.totalorder %s19, 0
      %p145 = por %p143, %p144
      %p146 = scmp.ne.s32.totalorder %s134, %s135
      %p147 = scmp.eq.s32.totalorder %s20, 1
      %p148 = por %p146, %p147
      %p150 = scmp.ne.s32.totalorder %s135, %s149
      %p151 = scmp.eq.s32.totalorder %s20, 0
      %p152 = por %p150, %p151
      %s154 = sadd.s32 %s153, 1
      %p157 = scmp.eq.s32.totalorder %s14, 1
      %p158 = scmp.ne.s32.totalorder %s153, %s155
      %p159 = scmp.eq.s32.totalorder %s14, 0
      %p160 = por %p158, %p159
      %p161 = scmp.ne.s32.totalorder %s153, %s155
      %p162 = scmp.eq.s32.totalorder %s19, 1
      %p163 = por %p161, %p162
      %p164 = scmp.ne.s32.totalorder %s155, %s156
      %p165 = scmp.eq.s32.totalorder %s19, 0
      %p166 = por %p164, %p165
      %p167 = scmp.ne.s32.totalorder %s155, %s156
      %p168 = scmp.eq.s32.totalorder %s20, 1
      %p169 = por %p167, %p168
      %p171 = scmp.ne.s32.totalorder %s156, %s170
      %p172 = scmp.eq.s32.totalorder %s20, 0
      %p173 = por %p171, %p172
      %s174 = ssub.s32 %s14, %s21
      %p175 = scmp.eq.s32.totalorder %s174, 0
      %s177 = sadd.s32 %s176, 1
      %s178 = scalar_select %p175, %s176, %s177
      %p181 = pneg %p175
      %p182 = scmp.eq.s32.totalorder %s14, 1
      %p183 = por %p181, %p182
      %p184 = scmp.ne.s32.totalorder %s176, %s179
      %p185 = scmp.eq.s32.totalorder %s14, 0
      %p186 = por %p184, %p185
      %p187 = scmp.ne.s32.totalorder %s176, %s179
      %p188 = scmp.eq.s32.totalorder %s19, 1
      %p189 = por %p187, %p188
      %p190 = scmp.ne.s32.totalorder %s179, %s180
      %p191 = scmp.eq.s32.totalorder %s19, 0
      %p192 = por %p190, %p191
      %p193 = scmp.ne.s32.totalorder %s179, %s180
      %p194 = scmp.eq.s32.totalorder %s20, 1
      %p195 = por %p193, %p194
      %p197 = scmp.ne.s32.totalorder %s180, %s196
      %p198 = scmp.eq.s32.totalorder %s20, 0
      %p199 = por %p197, %p198
      %p200 = scmp.le.s32.totalorder 1, %s14
      %p201 = scmp.lt.s32.totalorder %s14, 3
      %p202 = pnand %p200, %p201
      %p203 = pneg %p202
      // Predicated region
      $region9: #{tpu_custom_call.1} parent=5 // pred_check
        _
      $region10: #{tpu_custom_call.1} parent=5 // pred_check_branch
        %205 = sbr.rel (%p202) target = $region12
      $region11: #{tpu_custom_call.1} parent=5 // pred_region
        %s206 = ssub.s32 %s14, 1
        // Predicated region
        $region13: #{tpu_custom_call.1} parent=11 // pred_check
          %p207 = pneg %p61
        $region14: #{tpu_custom_call.1} parent=11 // pred_check_branch
          %209 = sbr.rel (%p207) target = $region16
        $region15: #{tpu_custom_call.1} parent=11 // pred_region
          _
        $region16: #{tpu_custom_call.1} parent=11 // pred_fallthru
          _
        // Predicated region
        $region17: #{tpu_custom_call.1} parent=11 // pred_check
          %p210 = pneg %p82
        $region18: #{tpu_custom_call.1} parent=11 // pred_check_branch
          %212 = sbr.rel (%p210) target = $region20
        $region19: #{tpu_custom_call.1} parent=11 // pred_region
          _
        $region20: #{tpu_custom_call.1} parent=11 // pred_fallthru
          _
        // Predicated region
        $region21: #{tpu_custom_call.1} parent=11 // pred_check
          %p213 = pneg %p103
        $region22: #{tpu_custom_call.1} parent=11 // pred_check_branch
          %215 = sbr.rel (%p213) target = $region24
        $region23: #{tpu_custom_call.1} parent=11 // pred_region
          %217 = vsyncadd [#allocation3], 0
          %s218 = sshll.u32 %s3, 4
          %s219 = int_to_ptr.hbm [resolvable:$true] %s218
          %s220 = sshll.u32 [#allocation2], 4
          %s221 = int_to_ptr.vmem [resolvable:$true] %s220
          %226 = dma.hbm_to_vmem [thread:$0]  %s219, 2048, %s221, [#allocation3], 64, 64, 4
        $region24: #{tpu_custom_call.1} parent=11 // pred_fallthru
          _
        // Predicated region
        $region25: #{tpu_custom_call.1} parent=11 // pred_check
          %p227 = pneg %p124
        $region26: #{tpu_custom_call.1} parent=11 // pred_check_branch
          %229 = sbr.rel (%p227) target = $region28
        $region27: #{tpu_custom_call.1} parent=11 // pred_region
          _
        $region28: #{tpu_custom_call.1} parent=11 // pred_fallthru
          _
        // Predicated region
        $region29: #{tpu_custom_call.1} parent=11 // pred_check
          %p230 = pneg %p145
        $region30: #{tpu_custom_call.1} parent=11 // pred_check_branch
          %232 = sbr.rel (%p230) target = $region32
        $region31: #{tpu_custom_call.1} parent=11 // pred_region
          _
        $region32: #{tpu_custom_call.1} parent=11 // pred_fallthru
          _
        // Predicated region
        $region33: #{tpu_custom_call.1} parent=11 // pred_check
          %p233 = pneg %p166
        $region34: #{tpu_custom_call.1} parent=11 // pred_check_branch
          %235 = sbr.rel (%p233) target = $region36
        $region35: #{tpu_custom_call.1} parent=11 // pred_region
          _
        $region36: #{tpu_custom_call.1} parent=11 // pred_fallthru
          _
      $region12: #{tpu_custom_call.1} parent=5 // pred_fallthru
        _
      %p236 = scmp.lt.s32.totalorder %s14, 2
      // Predicated region
      $region37: #{tpu_custom_call.1} parent=5 // pred_check
        %p237 = pneg %p236
      $region38: #{tpu_custom_call.1} parent=5 // pred_check_branch
        %239 = sbr.rel (%p237) target = $region40
      $region39: #{tpu_custom_call.1} parent=5 // pred_region
        // Predicated region
        $region41: #{tpu_custom_call.1} parent=39 // pred_check
          %p240 = pneg %p34
        $region42: #{tpu_custom_call.1} parent=39 // pred_check_branch
          %242 = sbr.rel (%p240) target = $region44
        $region43: #{tpu_custom_call.1} parent=39 // pred_region
          %s243 = smul.u32 2, %s14
          %p244 = scmp.lt.s32.totalorder %s243, 3
          %s245 = scalar_select %p244, %s243, 3
          %s246 = smul.addr %s245, 4
          %s247 = scalar_lea.vmem %s0, %s246
          %s248 = smul.u32 2, %s14
        $region44: #{tpu_custom_call.1} parent=39 // pred_fallthru
          _
      $region40: #{tpu_custom_call.1} parent=5 // pred_fallthru
        _
      %p249 = scmp.le.s32.totalorder 1, %s14
      %p250 = scmp.lt.s32.totalorder %s14, 3
      %p251 = pnand %p249, %p250
      %p252 = pneg %p251
      // Predicated region
      $region45: #{tpu_custom_call.1} parent=5 // pred_check
        _
      $region46: #{tpu_custom_call.1} parent=5 // pred_check_branch
        %254 = sbr.rel (%p251) target = $region48
      $region47: #{tpu_custom_call.1} parent=5 // pred_region
        %s255 = ssub.s32 %s14, 1
        // Predicated region
        $region49: #{tpu_custom_call.1} parent=47 // pred_check
          %p256 = pneg %p103
        $region50: #{tpu_custom_call.1} parent=47 // pred_check_branch
          %258 = sbr.rel (%p256) target = $region52
        $region51: #{tpu_custom_call.1} parent=47 // pred_region
          %260 = dma.done [#allocation3], 2048
        $region52: #{tpu_custom_call.1} parent=47 // pred_fallthru
          _
        %s261 = smul.u32 2, %s19
        %p262 = scmp.lt.s32.totalorder %s261, 3
        %s263 = scalar_select %p262, %s261, 3
        %s264 = smul.addr %s263, 4
        %s265 = scalar_lea.vmem %s0, %s264
        %p266 = pneg %p40
        %p267 = pneg %p37
        %p268 = pneg %p61
        %p269 = pneg %p58
        %p270 = pneg %p82
        %p271 = pneg %p79
        %p272 = pneg %p103
        %p273 = pneg %p100
        %p274 = pneg %p124
        %p275 = pneg %p121
        %p276 = pneg %p145
        %p277 = pneg %p142
        %p278 = pneg %p166
        %p279 = pneg %p163
        %p280 = pneg %p192
        %p281 = pneg %p189
        %s282 = smul.u32 2, %s19
        %p283 = scmp.lt.s32.totalorder %s282, 3
        %s284 = scalar_select %p283, %s282, 3
        %s285 = smul.addr %s284, 8
        %s286 = scalar_lea.vmem %s7, %s285
        %s287 = smul.u32 2, %s19
        %p288 = scmp.lt.s32.totalorder %s287, 3
        %s289 = scalar_select %p288, %s287, 3
        %s290 = smul.addr %s289, 4
        %s291 = scalar_lea.vmem %s0, %s290
        %s292 = smul.u32 2, %s19
        %s293 = smul.u32 2, %s19
        %p294 = scmp.lt.s32.totalorder %s293, 3
        %s295 = scalar_select %p294, %s293, 3
        %s296 = smul.addr %s295, 8
        %s297 = scalar_lea.vmem %s7, %s296
        %s298 = smul.u32 2, %s19
        %v300 = vld [vmem:[%s291] sm:$0xf]
        %v301 = vld [vmem:[%s291 + $0x4] sm:$0xf]
        %v302 = vld [vmem:[%s1] sm:$0xff]
        %v303 = vld [vmem:[%s1 + $0x8] sm:$0xff]
        %v304 = vld [vmem:[%s1 + $0x10] sm:$0xff]
        %v305 = vld [vmem:[%s1 + $0x18] sm:$0xff]
        %v306 = vld [vmem:[%s1 + $0x20] sm:$0xff]
        %v307 = vld [vmem:[%s1 + $0x28] sm:$0x11]
        %v308 = vld [vmem:[%s2] sm:$0x3]
        %v310 = vperm.slane %v308, 0
        %v311 = vperm.slane %v308, 1
        %v316 = vunpack.c.l.b16 %v300
        %v317 = vunpack.c.l.b16 %v301
        %v318 = vpack.c.b16 %v317, %v316
        %v325 = vunpack.c.l.b16 %v302
        %v326 = vunpack.c.h.b16 %v302
        %v327 = vunpack.c.l.b16 %v303
        %v328 = vunpack.c.h.b16 %v303
        %v329 = vunpack.c.l.b16 %v304
        %v330 = vunpack.c.h.b16 %v304
        %v331 = vunpack.c.l.b16 %v305
        %v332 = vunpack.c.h.b16 %v305
        %v333 = vunpack.c.l.b16 %v306
        %v334 = vunpack.c.h.b16 %v306
        %v335 = vunpack.c.l.b16 %v307
        %v336 = vunpack.c.h.b16 %v307
        %v337 = vpack.c.b16 %v327, %v325
        %v338 = vpack.c.b16 %v328, %v326
        %v339 = vpack.c.b16 %v331, %v329
        %v340 = vpack.c.b16 %v332, %v330
        %v341 = vpack.c.b16 %v335, %v333
        %v342 = vpack.c.b16 %v336, %v334
        %vm347 = vcmask 343040
        %v349 = vsel %vm347, %v318, 0
        %vm351 = vcmask 1044480
        %v353 = vsel %vm351, %v341, 0
        %v356 = vsel %vm351, %v342, 0
        %358 = vmatpush.bf16.msra.mxu0 0
        %359 = vmatpush.bf16.msra.mxu0 0
        %360 = vmatpush.bf16.msra.mxu0 0
        %361 = vmatpush.bf16.msra.mxu0 0
        %362 = vmatpush.bf16.msra.mxu0 0
        %363 = vmatpush.bf16.msra.mxu0 %v353
        %364 = vmatpush.bf16.msra.mxu0 %v339
        %365 = vmatpush.bf16.msra.mxu0 %v337
        %366 = vmatmul.bf16.gmra.mxu0 %v349
        %v367 = vpop.f32.mrf.mxu0
        %v368 = vadd.f32 %v310, %v367
        %v369 = vpop.f32.mrf.mxu0
        %v370 = vadd.f32 %v310, %v369
        %371 = vdwg.mxu0
        %372 = vmatpush.bf16.msra.mxu0 0
        %373 = vmatpush.bf16.msra.mxu0 0
        %374 = vmatpush.bf16.msra.mxu0 0
        %375 = vmatpush.bf16.msra.mxu0 0
        %376 = vmatpush.bf16.msra.mxu0 0
        %377 = vmatpush.bf16.msra.mxu0 %v356
        %378 = vmatpush.bf16.msra.mxu0 %v340
        %379 = vmatpush.bf16.msra.mxu0 %v338
        %380 = vmatmul.bf16.gmra.mxu0 %v349
        %v381 = vpop.f32.mrf.mxu0
        %v382 = vadd.f32 %v311, %v381
        %v383 = vpop.f32.mrf.mxu0
        %v384 = vadd.f32 %v311, %v383
        %385 = vdwg.mxu0
        %v386 = vmax.f32 %v368, 0.0
        %v387 = vmax.f32 %v382, 0.0
        %v388 = vmax.f32 %v370, 0.0
        %v389 = vmax.f32 %v384, 0.0
        %v390 = vpack.c.bf16 %v388, %v386
        %v391 = vpack.c.bf16 %v389, %v387
        %v392 = vld [vmem:[#allocation2] sm:$0xf]
        %v393 = vld [vmem:[#allocation2 + $0x4] sm:$0xf]
        %v394 = vld [vmem:[#allocation2 + $0x8] sm:$0xf]
        %v395 = vld [vmem:[#allocation2 + $0xc] sm:$0xf]
        %v396 = vld [vmem:[#allocation2 + $0x10] sm:$0xf]
        %v397 = vld [vmem:[#allocation2 + $0x14] sm:$0xf]
        %v398 = vld [vmem:[#allocation2 + $0x18] sm:$0xf]
        %v399 = vld [vmem:[#allocation2 + $0x1c] sm:$0xf]
        %v400 = vld [vmem:[#allocation2 + $0x20] sm:$0xf]
        %v401 = vld [vmem:[#allocation2 + $0x24] sm:$0xf]
        %v402 = vld [vmem:[#allocation2 + $0x28] sm:$0xf]
        %v403 = vld [vmem:[#allocation2 + $0x2c] sm:$0xf]
        %v404 = vld [vmem:[#allocation2 + $0x30] sm:$0xf]
        %v405 = vld [vmem:[#allocation2 + $0x34] sm:$0xf]
        %v406 = vld [vmem:[#allocation2 + $0x38] sm:$0xf]
        %v407 = vld [vmem:[#allocation2 + $0x3c] sm:$0xf]
        %v408 = vld [vmem:[#allocation2 + $0x40] sm:$0xf]
        %v409 = vld [vmem:[#allocation2 + $0x44] sm:$0xf]
        %v410 = vld [vmem:[#allocation2 + $0x48] sm:$0xf]
        %v411 = vld [vmem:[#allocation2 + $0x4c] sm:$0xf]
        %v412 = vld [vmem:[#allocation2 + $0x50] sm:$0xf]
        %v413 = vld [vmem:[#allocation2 + $0x54] sm:$0xf]
        %v414 = vld [vmem:[#allocation2 + $0x58] sm:$0xf]
        %v415 = vld [vmem:[#allocation2 + $0x5c] sm:$0xf]
        %v416 = vld [vmem:[#allocation2 + $0x60] sm:$0xf]
        %v417 = vld [vmem:[#allocation2 + $0x64] sm:$0xf]
        %v418 = vld [vmem:[#allocation2 + $0x68] sm:$0xf]
        %v419 = vld [vmem:[#allocation2 + $0x6c] sm:$0xf]
        %v420 = vld [vmem:[#allocation2 + $0x70] sm:$0xf]
        %v421 = vld [vmem:[#allocation2 + $0x74] sm:$0xf]
        %v422 = vld [vmem:[#allocation2 + $0x78] sm:$0xf]
        %v423 = vld [vmem:[#allocation2 + $0x7c] sm:$0xf]
        %v424 = vld [vmem:[%s4] sm:$0x1]
        %v426 = vperm.slane %v424, 0
        %v460 = vunpack.c.l.b16 %v392
        %v461 = vunpack.c.l.b16 %v393
        %v462 = vunpack.c.l.b16 %v394
        %v463 = vunpack.c.l.b16 %v395
        %v464 = vunpack.c.l.b16 %v396
        %v465 = vunpack.c.l.b16 %v397
        %v466 = vunpack.c.l.b16 %v398
        %v467 = vunpack.c.l.b16 %v399
        %v468 = vunpack.c.l.b16 %v400
        %v469 = vunpack.c.l.b16 %v401
        %v470 = vunpack.c.l.b16 %v402
        %v471 = vunpack.c.l.b16 %v403
        %v472 = vunpack.c.l.b16 %v404
        %v473 = vunpack.c.l.b16 %v405
        %v474 = vunpack.c.l.b16 %v406
        %v475 = vunpack.c.l.b16 %v407
        %v476 = vunpack.c.l.b16 %v408
        %v477 = vunpack.c.l.b16 %v409
        %v478 = vunpack.c.l.b16 %v410
        %v479 = vunpack.c.l.b16 %v411
        %v480 = vunpack.c.l.b16 %v412
        %v481 = vunpack.c.l.b16 %v413
        %v482 = vunpack.c.l.b16 %v414
        %v483 = vunpack.c.l.b16 %v415
        %v484 = vunpack.c.l.b16 %v416
        %v485 = vunpack.c.l.b16 %v417
        %v486 = vunpack.c.l.b16 %v418
        %v487 = vunpack.c.l.b16 %v419
        %v488 = vunpack.c.l.b16 %v420
        %v489 = vunpack.c.l.b16 %v421
        %v490 = vunpack.c.l.b16 %v422
        %v491 = vunpack.c.l.b16 %v423
        %v492 = vpack.c.b16 %v461, %v460
        %v493 = vpack.c.b16 %v463, %v462
        %v494 = vpack.c.b16 %v465, %v464
        %v495 = vpack.c.b16 %v467, %v466
        %v496 = vpack.c.b16 %v469, %v468
        %v497 = vpack.c.b16 %v471, %v470
        %v498 = vpack.c.b16 %v473, %v472
        %v499 = vpack.c.b16 %v475, %v474
        %v500 = vpack.c.b16 %v477, %v476
        %v501 = vpack.c.b16 %v479, %v478
        %v502 = vpack.c.b16 %v481, %v480
        %v503 = vpack.c.b16 %v483, %v482
        %v504 = vpack.c.b16 %v485, %v484
        %v505 = vpack.c.b16 %v487, %v486
        %v506 = vpack.c.b16 %v489, %v488
        %v507 = vpack.c.b16 %v491, %v490
        %524 = vmatpush.bf16.msra.mxu0 %v499
        %525 = vmatpush.bf16.msra.mxu0 %v498
        %526 = vmatpush.bf16.msra.mxu0 %v497
        %527 = vmatpush.bf16.msra.mxu0 %v496
        %528 = vmatpush.bf16.msra.mxu0 %v495
        %529 = vmatpush.bf16.msra.mxu0 %v494
        %530 = vmatpush.bf16.msra.mxu0 %v493
        %531 = vmatpush.bf16.msra.mxu0 %v492
        %532 = vmatmul.bf16.gmra.mxu0 %v390
        %v533 = vpop.f32.mrf.mxu0
        %v534 = vadd.f32 %v426, %v533
        %v535 = vpop.f32.mrf.mxu0
        %v536 = vadd.f32 %v426, %v535
        %537 = vdwg.mxu0
        %538 = vmatpush.bf16.msra.mxu0 %v507
        %539 = vmatpush.bf16.msra.mxu0 %v506
        %540 = vmatpush.bf16.msra.mxu0 %v505
        %541 = vmatpush.bf16.msra.mxu0 %v504
        %542 = vmatpush.bf16.msra.mxu0 %v503
        %543 = vmatpush.bf16.msra.mxu0 %v502
        %544 = vmatpush.bf16.msra.mxu0 %v501
        %545 = vmatpush.bf16.msra.mxu0 %v500
        %546 = vmatmul.bf16.gmra.mxu0 %v391
        %v547 = vpop.f32.mrf.mxu0
        %v548 = vadd.f32 %v534, %v547
        %v549 = vpop.f32.mrf.mxu0
        %v550 = vadd.f32 %v536, %v549
        %551 = vdwg.mxu0
        %v552 = vmax.f32 %v548, 0.0
        %v553 = vmax.f32 %v550, 0.0
        %v554 = vpack.c.bf16 %v553, %v552
        %v555 = vld [vmem:[%s5] sm:$0xf]
        %v556 = vld [vmem:[%s5 + $0x4] sm:$0xf]
        %v557 = vld [vmem:[%s5 + $0x8] sm:$0xf]
        %v558 = vld [vmem:[%s5 + $0xc] sm:$0xf]
        %v559 = vld [vmem:[%s5 + $0x10] sm:$0xf]
        %v560 = vld [vmem:[%s5 + $0x14] sm:$0xf]
        %v561 = vld [vmem:[%s5 + $0x18] sm:$0xf]
        %v562 = vld [vmem:[%s5 + $0x1c] sm:$0xf]
        %v563 = vld [vmem:[%s5 + $0x20] sm:$0xf]
        %v564 = vld [vmem:[%s5 + $0x24] sm:$0xf]
        %v565 = vld [vmem:[%s5 + $0x28] sm:$0xf]
        %v566 = vld [vmem:[%s5 + $0x2c] sm:$0xf]
        %v567 = vld [vmem:[%s5 + $0x30] sm:$0xf]
        %v568 = vld [vmem:[%s5 + $0x34] sm:$0xf]
        %v569 = vld [vmem:[%s5 + $0x38] sm:$0xf]
        %v570 = vld [vmem:[%s5 + $0x3c] sm:$0xf]
        %v571 = vld [vmem:[%s6] sm:$0x1]
        %v573 = vperm.slane %v571, 0
        %v591 = vunpack.c.l.b16 %v555
        %v592 = vunpack.c.l.b16 %v556
        %v593 = vunpack.c.l.b16 %v557
        %v594 = vunpack.c.l.b16 %v558
        %v595 = vunpack.c.l.b16 %v559
        %v596 = vunpack.c.l.b16 %v560
        %v597 = vunpack.c.l.b16 %v561
        %v598 = vunpack.c.l.b16 %v562
        %v599 = vunpack.c.l.b16 %v563
        %v600 = vunpack.c.l.b16 %v564
        %v601 = vunpack.c.l.b16 %v565
        %v602 = vunpack.c.l.b16 %v566
        %v603 = vunpack.c.l.b16 %v567
        %v604 = vunpack.c.l.b16 %v568
        %v605 = vunpack.c.l.b16 %v569
        %v606 = vunpack.c.l.b16 %v570
        %v607 = vpack.c.b16 %v592, %v591
        %v608 = vpack.c.b16 %v594, %v593
        %v609 = vpack.c.b16 %v596, %v595
        %v610 = vpack.c.b16 %v598, %v597
        %v611 = vpack.c.b16 %v600, %v599
        %v612 = vpack.c.b16 %v602, %v601
        %v613 = vpack.c.b16 %v604, %v603
        %v614 = vpack.c.b16 %v606, %v605
        %623 = vmatpush.bf16.msra.mxu0 %v614
        %624 = vmatpush.bf16.msra.mxu0 %v613
        %625 = vmatpush.bf16.msra.mxu0 %v612
        %626 = vmatpush.bf16.msra.mxu0 %v611
        %627 = vmatpush.bf16.msra.mxu0 %v610
        %628 = vmatpush.bf16.msra.mxu0 %v609
        %629 = vmatpush.bf16.msra.mxu0 %v608
        %630 = vmatpush.bf16.msra.mxu0 %v607
        %631 = vmatmul.bf16.gmra.mxu0 %v554
        %v632 = vpop.f32.mrf.mxu0
        %v633 = vadd.f32 %v573, %v632
        %v634 = vpop.f32.mrf.mxu0
        %v635 = vadd.f32 %v573, %v634
        %636 = vdwg.mxu0
        %v637 = vmax.f32 %v633, 0.0
        %v638 = vmax.f32 %v635, 0.0
        %vm639 = vcmask 56320
        %640 = vst.msk [vmem:[%s297] sm:$0xff] %vm639, %v637
        %641 = vst.msk [vmem:[%s297 + $0x8] sm:$0xff] %vm639, %v638
        %s642 = smul.u32 2, %s19
        %p643 = scmp.lt.s32.totalorder %s642, 3
        %s644 = scalar_select %p643, %s642, 3
        %s645 = smul.addr %s644, 8
        %s646 = scalar_lea.vmem %s7, %s645
        // Predicated region
        $region53: #{tpu_custom_call.1} parent=47 // pred_check
          %p647 = pneg %p189
        $region54: #{tpu_custom_call.1} parent=47 // pred_check_branch
          %649 = sbr.rel (%p647) target = $region56
        $region55: #{tpu_custom_call.1} parent=47 // pred_region
          %s650 = smul.u32 2, %s19
        $region56: #{tpu_custom_call.1} parent=47 // pred_fallthru
          _
      $region48: #{tpu_custom_call.1} parent=5 // pred_fallthru
        _
      %p651 = scmp.le.s32.totalorder 2, %s14
      // Predicated region
      $region57: #{tpu_custom_call.1} parent=5 // pred_check
        %p652 = pneg %p651
      $region58: #{tpu_custom_call.1} parent=5 // pred_check_branch
        %654 = sbr.rel (%p652) target = $region60
      $region59: #{tpu_custom_call.1} parent=5 // pred_region
        %s655 = ssub.s32 %s14, 2
        // Predicated region
        $region61: #{tpu_custom_call.1} parent=59 // pred_check
          %p656 = pneg %p195
        $region62: #{tpu_custom_call.1} parent=59 // pred_check_branch
          %658 = sbr.rel (%p656) target = $region64
        $region63: #{tpu_custom_call.1} parent=59 // pred_region
          %s659 = smul.u32 2, %s20
          %p660 = scmp.lt.s32.totalorder %s659, 3
          %s661 = scalar_select %p660, %s659, 3
          %s662 = smul.addr %s661, 8
          %s663 = scalar_lea.vmem %s7, %s662
        $region64: #{tpu_custom_call.1} parent=59 // pred_fallthru
          _
      $region60: #{tpu_custom_call.1} parent=5 // pred_fallthru
        _
    $region6: #{tpu_custom_call.1} parent=1 // loop_footer
      %s18 = sadd.s32 1, %s14
    $region7: #{tpu_custom_call.1} parent=1 // loop_footer_branch
      %13 = sbr.rel target = $region3
    $region8: #{tpu_custom_call.1} parent=1 // loop_exit
      _
    %664 = vsyncpa [#allocation3], 1
    %s665 = scalar_lea.sflag [#allocation3], 1
    %666 = vsyncpa %s665, 1

</llo_original>
